<compile_context>
chip_gen: v6e
topology: v6e:2x2x1
jax: 0.10.0
libtpu: 0.0.40
codegen_flags: <defaults>
</compile_context>

<pallas_src>
import functools

import jax
import jax.numpy as jnp
from jax import lax
from jax.experimental import pallas as pl
from jax.experimental.pallas import tpu as pltpu

LANES = 128
PREFERRED_TILE_ROWS = 1024   # (1024, 128) f32 = 512 KiB per input buffer
MIN_ROWS_FOR_PALLAS = 8      # below this a Pallas call is pure overhead


# ---------------------------------------------------------------------------
# Kernels: each grid step reduces one (tile_rows, 128) block to per-lane
# partial sums and writes them into row 0 of its own (8, 128) output block
# (rows 1..7 are zeroed).  Blocks are independent -> "parallel" grid axis.
# ---------------------------------------------------------------------------
def _bce_block_kernel(x_ref, t_ref, out_ref, *, pos_weight, epsilon):
    x = x_ref[...].astype(jnp.float32)
    t = t_ref[...].astype(jnp.float32)
    loss = (-pos_weight * t * jnp.log(x + epsilon)
            - (1.0 - t) * jnp.log(1.0 - x + epsilon))
    psum = jnp.sum(loss, axis=0, keepdims=True)                  # (1, LANES)
    row0 = lax.broadcasted_iota(jnp.int32, (8, LANES), 0) == 0
    out_ref[...] = jnp.where(row0, psum, 0.0)                    # (8, LANES)


def _sq_block_kernel(w_ref, out_ref):
    w = w_ref[...].astype(jnp.float32)
    psum = jnp.sum(w * w, axis=0, keepdims=True)                 # (1, LANES)
    row0 = lax.broadcasted_iota(jnp.int32, (8, LANES), 0) == 0
    out_ref[...] = jnp.where(row0, psum, 0.0)                    # (8, LANES)


# ---------------------------------------------------------------------------
# Planning / pallas_call helpers
# ---------------------------------------------------------------------------
def _plan(n_elems):
    """Choose (main_rows, tile_rows, n_blocks) for a flat array of n elements.

    The Pallas kernel only sees whole (tile_rows, 128) blocks; the remainder
    (< tile_rows*128 + 128 elements) is handled by plain jnp by the caller.
    """
    rows = n_elems // LANES
    if rows < MIN_ROWS_FOR_PALLAS:
        return 0, 0, 0
    if rows >= PREFERRED_TILE_ROWS:
        tile = PREFERRED_TILE_ROWS
        nblk = rows // tile
    else:
        tile = rows            # single full-extent block (any row count is OK)
        nblk = 1
    return tile * nblk, tile, nblk


def _partial_sums(kernel, inputs_2d, tile, nblk):
    """Run `kernel` over a 1-D grid of blocks; return (nblk*8, 128) partials."""
    in_specs = [pl.BlockSpec((tile, LANES), lambda i: (i, 0)) for _ in inputs_2d]
    return pl.pallas_call(
        kernel,
        out_shape=jax.ShapeDtypeStruct((nblk * 8, LANES), jnp.float32),
        grid_spec=pltpu.PrefetchScalarGridSpec(
            num_scalar_prefetch=0,
            grid=(nblk,),
            in_specs=in_specs,
            out_specs=pl.BlockSpec((8, LANES), lambda i: (i, 0)),
        ),
        compiler_params=pltpu.CompilerParams(
            dimension_semantics=("parallel",)),
    )(*inputs_2d)


# ---------------------------------------------------------------------------
# Loss sum (weighted BCE) over the whole logits/target tensors
# ---------------------------------------------------------------------------
def _bce_remainder_sum(x, t, pos_weight, epsilon):
    x = x.astype(jnp.float32)
    t = t.astype(jnp.float32)
    return jnp.sum(-pos_weight * t * jnp.log(x + epsilon)
                   - (1.0 - t) * jnp.log(1.0 - x + epsilon))


def _bce_loss_sum(flat_x, flat_t, pos_weight, epsilon):
    n = flat_x.shape[0]
    main_rows, tile, nblk = _plan(n)
    total = jnp.float32(0.0)
    main = main_rows * LANES
    if nblk > 0:
        kernel = functools.partial(_bce_block_kernel,
                                   pos_weight=float(pos_weight),
                                   epsilon=float(epsilon))
        partials = _partial_sums(
            kernel,
            [flat_x[:main].reshape(main_rows, LANES),
             flat_t[:main].reshape(main_rows, LANES)],
            tile, nblk)
        total = total + jnp.sum(partials)
    if main < n:
        # Remainder (< one block + 128 elems): trivial fused XLA reduce.
        total = total + _bce_remainder_sum(flat_x[main:], flat_t[main:],
                                           pos_weight, epsilon)
    return total


# ---------------------------------------------------------------------------
# Sum of squares of a single parameter tensor
# ---------------------------------------------------------------------------
def _sum_of_squares(w):
    flat = jnp.ravel(w)
    n = flat.shape[0]
    main_rows, tile, nblk = _plan(n)
    if nblk == 0:
        return jnp.sum(jnp.square(flat.astype(jnp.float32)))
    main = main_rows * LANES
    partials = _partial_sums(_sq_block_kernel,
                             [flat[:main].reshape(main_rows, LANES)],
                             tile, nblk)
    total = jnp.sum(partials)
    if main < n:
        total = total + jnp.sum(jnp.square(flat[main:].astype(jnp.float32)))
    return total


# ---------------------------------------------------------------------------
# Wrapper: SetCriterion_PR.forward
# ---------------------------------------------------------------------------
def set_criterion_pr_forward(logits, target, model_state_dict,
                             pos_weight=1.0, reduction="mean", epsilon=1e-6):
    # NOTE: pos_weight / epsilon are baked into the kernel as Python floats;
    # passing traced arrays for them is not supported (by design).
    flat_x = jnp.ravel(logits)
    flat_t = jnp.ravel(target)   # may be bf16 for binary masks (exact, less HBM)
    n = flat_x.shape[0]

    loss_sum = _bce_loss_sum(flat_x, flat_t, pos_weight, epsilon)

    if reduction == "mean":
        loss = loss_sum / jnp.float32(n)
    elif reduction == "sum":
        loss = loss_sum
    else:
        # TODO(synk): reduction='none' should return the full elementwise loss map; only the scalar path is implemented.
        loss = loss_sum

    norm = jnp.float32(0.0)
    for name, param in model_state_dict.items():
        if "weight" in name:
            norm = norm + _sum_of_squares(param)

    return loss + norm * jnp.float32(1e-5)


# ---------------------------------------------------------------------------
# Reference (pure JAX) for sanity check
# ---------------------------------------------------------------------------
def _reference(logits, target, model_state_dict, pos_weight=1.0, epsilon=1e-6):
    x = logits.astype(jnp.float32)
    t = target.astype(jnp.float32)
    loss = (-pos_weight * t * jnp.log(x + epsilon)
            - (1.0 - t) * jnp.log(1.0 - x + epsilon)).mean()
    norm = jnp.float32(0.0)
    for name, v in model_state_dict.items():
        if "weight" in name:
            norm = norm + jnp.sum(jnp.square(v.astype(jnp.float32)))
    return loss + norm * 1e-5


if __name__ == "__main__":
    key = jax.random.PRNGKey(0)
    k1, k2, k3, k4, k5, k6, k7 = jax.random.split(key, 7)

    # Main check: small saliency-style NCHW logits/target maps.
    B, C, H, W = 2, 4, 16, 16
    logits = jax.random.uniform(k1, (B, C, H, W), jnp.float32,
                                minval=0.01, maxval=0.99)
    # Binary target: bf16 is exact for {0,1} and halves the target HBM stream.
    target = (jax.random.uniform(k2, (B, C, H, W), jnp.float32) > 0.5
              ).astype(jnp.bfloat16)

    # Synthetic "model" state dict; only 'weight'-named params enter the norm.
    # head.weight is big enough to exercise the Pallas sum-of-squares kernel.
    model_state_dict = {
        "conv1.weight": 0.05 * jax.random.normal(k3, (4, 4, 3, 3), jnp.float32),
        "conv1.bias": jnp.zeros((4,), jnp.float32),
        "fc.weight": 0.05 * jax.random.normal(k4, (32, 16), jnp.float32),
        "head.weight": 0.02 * jax.random.normal(k5, (128, 1024), jnp.float32),
    }

    out = set_criterion_pr_forward(logits, target, model_state_dict,
                                   pos_weight=1.0, reduction="mean",
                                   epsilon=1e-6)
    out = jax.block_until_ready(out)
    ref = _reference(logits, target, model_state_dict)
    assert jnp.allclose(out, ref, rtol=5e-5, atol=1e-6), (out, ref)

    # Second check: non-128-divisible size -> exercises the multi-block
    # "parallel" grid plus the plain-jnp remainder path.
    logits2 = jax.random.uniform(k6, (2, 4, 200, 200), jnp.float32,
                                 minval=0.01, maxval=0.99)
    target2 = (jax.random.uniform(k7, (2, 4, 200, 200), jnp.float32) > 0.5
               ).astype(jnp.float32)
    out2 = jax.block_until_ready(
        set_criterion_pr_forward(logits2, target2, model_state_dict,
                                 pos_weight=2.0, reduction="mean",
                                 epsilon=1e-6))
    ref2 = _reference(logits2, target2, model_state_dict, pos_weight=2.0)
    assert jnp.allclose(out2, ref2, rtol=5e-5, atol=1e-6), (out2, ref2)

    print("KERNEL_OK")
</pallas_src>

<mosaic_0001>
module attributes {stable_mosaic.version = 11 : i64} {
  func.func @_bce_block_kernel(%arg0: i32, %arg1: memref<16x128xf32, #tpu.memory_space<vmem>>, %arg2: memref<16x128xbf16, #tpu.memory_space<vmem>>, %arg3: memref<8x128xf32, #tpu.memory_space<vmem>>) attributes {dimension_semantics = [#tpu.dimension_semantics<parallel>], iteration_bounds = array<i64: 1>, scalar_prefetch = 0 : i64, scratch_operands = 0 : i64, tpu.core_type = #tpu.core_type<tc>, window_params = [{transform_indices = @transform_0, window_bounds = array<i64: 16, 128>}, {transform_indices = @transform_1, window_bounds = array<i64: 16, 128>}, {transform_indices = @transform_2, window_bounds = array<i64: 8, 128>}]} {
    %c0 = arith.constant 0 : index
    %c0_0 = arith.constant 0 : index
    %0 = vector.load %arg1[%c0, %c0_0] : memref<16x128xf32, #tpu.memory_space<vmem>>, vector<16x128xf32>
    %c0_1 = arith.constant 0 : index
    %c0_2 = arith.constant 0 : index
    %1 = vector.load %arg2[%c0_1, %c0_2] : memref<16x128xbf16, #tpu.memory_space<vmem>>, vector<16x128xbf16>
    %2 = arith.extf %1 : vector<16x128xbf16> to vector<16x128xf32>
    %cst = arith.constant -1.000000e+00 : f32
    %3 = vector.broadcast %cst : f32 to vector<16x128xf32>
    %4 = arith.mulf %3, %2 : vector<16x128xf32>
    %cst_3 = arith.constant 9.99999997E-7 : f32
    %5 = vector.broadcast %cst_3 : f32 to vector<16x128xf32>
    %6 = arith.addf %0, %5 : vector<16x128xf32>
    %7 = math.log %6 : vector<16x128xf32>
    %8 = arith.mulf %4, %7 : vector<16x128xf32>
    %cst_4 = arith.constant 1.000000e+00 : f32
    %9 = vector.broadcast %cst_4 : f32 to vector<16x128xf32>
    %10 = arith.subf %9, %2 : vector<16x128xf32>
    %cst_5 = arith.constant 1.000000e+00 : f32
    %11 = vector.broadcast %cst_5 : f32 to vector<16x128xf32>
    %12 = arith.subf %11, %0 : vector<16x128xf32>
    %cst_6 = arith.constant 9.99999997E-7 : f32
    %13 = vector.broadcast %cst_6 : f32 to vector<16x128xf32>
    %14 = arith.addf %12, %13 : vector<16x128xf32>
    %15 = math.log %14 : vector<16x128xf32>
    %16 = arith.mulf %10, %15 : vector<16x128xf32>
    %17 = arith.subf %8, %16 : vector<16x128xf32>
    %cst_7 = arith.constant dense<0.000000e+00> : vector<128xf32>
    %18 = vector.multi_reduction <add>, %17, %cst_7 [0] : vector<16x128xf32> to vector<128xf32>
    %19 = vector.shape_cast %18 : vector<128xf32> to vector<1x128xf32>
    %20 = tpu.iota {dimensions = array<i32: 0>} : vector<8x128xi32>
    %c0_i32 = arith.constant 0 : i32
    %21 = vector.broadcast %c0_i32 : i32 to vector<8x128xi32>
    %22 = arith.cmpi eq, %20, %21 : vector<8x128xi32>
    %cst_8 = arith.constant 0.000000e+00 : f32
    %23 = vector.shape_cast %19 : vector<1x128xf32> to vector<1x128xf32>
    %24 = vector.broadcast %23 : vector<1x128xf32> to vector<8x128xf32>
    %25 = vector.broadcast %cst_8 : f32 to vector<8x128xf32>
    %26 = arith.select %22, %24, %25 : vector<8x128xi1>, vector<8x128xf32>
    %c0_9 = arith.constant 0 : index
    %c0_10 = arith.constant 0 : index
    %27 = vector.load %arg3[%c0_9, %c0_10] : memref<8x128xf32, #tpu.memory_space<vmem>>, vector<8x128xf32>
    tpu.vector_store %arg3[%c0_9, %c0_10], %26 {strides = array<i32>} : memref<8x128xf32, #tpu.memory_space<vmem>>, vector<8x128xf32>,
    return
  }
  func.func @transform_0(%arg0: i32) -> (i32, i32) {
    %c0_i32 = arith.constant 0 : i32
    %c0_i32_0 = arith.constant 0 : i32
    return %arg0, %c0_i32 : i32, i32
  }
  func.func @transform_1(%arg0: i32) -> (i32, i32) {
    %c0_i32 = arith.constant 0 : i32
    %c0_i32_0 = arith.constant 0 : i32
    return %arg0, %c0_i32 : i32, i32
  }
  func.func @transform_2(%arg0: i32) -> (i32, i32) {
    %c0_i32 = arith.constant 0 : i32
    %c0_i32_0 = arith.constant 0 : i32
    return %arg0, %c0_i32 : i32, i32
  }
}

</mosaic_0001>

<llo_original>
// kernel: tpu_custom_call.1
$region0: #{tpu_custom_call.1}
  #allocation0 [shape = 'u32[]', space=smem, size = 0x4, offset = 0x4, fixed_abs, tag = 'smem constant byte address 0x4 - core index']
  #allocation1 [shape = 'u32[144,128]{1,0:T(1,128)}', space=vmem, size = 0x12000, scoped, tag = 'internal scratch']
  %s0 = inlined_call_operand.hbm [shape: f32[16,128], index: 0, kind: input, shape index: {}]
  %s1 = inlined_call_operand.hbm [shape: bf16[16,128], index: 1, kind: input, shape index: {}]
  %s2 = inlined_call_operand.hbm [shape: f32[8,128], index: 2, kind: output, shape index: {}]
  %s3 = sld [smem:[#allocation0]]
  $region26: #{tpu_custom_call.1} parent=0
    _
  %s5 = ssub.s32 1, %s3
  %s6 = scalar_select 0, %s5, %s3
  $region1: #{tpu_custom_call.1} parent=0
    #allocation2 [shape = 'u8[8192]{0}', space=vmem, size = 0x2000, scoped, tag = 'input window, operand 0, single buffered']
    #allocation3 [shape = 's32[1]{0}', space=sflag, size = 0x4, scoped, tag = 'scoped memory for tpu_custom_call.1']
    #allocation4 [shape = 's32[1]{0}', space=sflag, size = 0x4, scoped, tag = 'scoped memory for tpu_custom_call.1']
    #allocation5 [shape = 'u8[4096]{0}', space=vmem, size = 0x1000, scoped, tag = 'input window, operand 1, single buffered']
    #allocation6 [shape = 's32[1]{0}', space=sflag, size = 0x4, scoped, tag = 'scoped memory for tpu_custom_call.1']
    #allocation7 [shape = 'u8[4096]{0}', space=vmem, size = 0x1000, scoped, tag = 'output window, operand 0, single buffered']
    %7 = vsyncpa [#allocation3], 0
    %8 = vsyncpa [#allocation6], 0
    %9 = vsyncpa [#allocation4], 0
    // Predicated region
    $region2: #{tpu_custom_call.1} parent=1 // pred_check
      _
    $region3: #{tpu_custom_call.1} parent=1 // pred_check_branch
      %11 = sbr.rel (0) target = $region5
    $region4: #{tpu_custom_call.1} parent=1 // pred_region
      %s13 = ssub.s32 256, 256
      %14 = vsyncadd [#allocation3], %s13
      %s15 = sshll.u32 [#allocation2], 4
      %s16 = int_to_ptr.vmem [resolvable:$true] %s15
      %21 = dma.hbm_to_vmem [thread:$0]  %s0, 256, %s16, [#allocation3], 128, 128, 8
    $region5: #{tpu_custom_call.1} parent=1 // pred_fallthru
      _
    // Predicated region
    $region6: #{tpu_custom_call.1} parent=1 // pred_check
      _
    $region7: #{tpu_custom_call.1} parent=1 // pred_check_branch
      %23 = sbr.rel (0) target = $region9
    $region8: #{tpu_custom_call.1} parent=1 // pred_region
      %s25 = ssub.s32 128, 128
      %26 = vsyncadd [#allocation6], %s25
      %s27 = sshll.u32 [#allocation5], 4
      %s28 = int_to_ptr.vmem [resolvable:$true] %s27
      %33 = dma.hbm_to_vmem [thread:$0]  %s1, 128, %s28, [#allocation6], 64, 64, 4
    $region9: #{tpu_custom_call.1} parent=1 // pred_fallthru
      _
    // Predicated region
    $region10: #{tpu_custom_call.1} parent=1 // pred_check
      _
    $region11: #{tpu_custom_call.1} parent=1 // pred_check_branch
      %35 = sbr.rel (0) target = $region13
    $region12: #{tpu_custom_call.1} parent=1 // pred_region
      %36 = dma.done [#allocation3], 256
    $region13: #{tpu_custom_call.1} parent=1 // pred_fallthru
      _
    // Predicated region
    $region14: #{tpu_custom_call.1} parent=1 // pred_check
      _
    $region15: #{tpu_custom_call.1} parent=1 // pred_check_branch
      %38 = sbr.rel (0) target = $region17
    $region16: #{tpu_custom_call.1} parent=1 // pred_region
      %39 = dma.done [#allocation6], 128
    $region17: #{tpu_custom_call.1} parent=1 // pred_fallthru
      _
    %v40 = vld [vmem:[#allocation2] sm:$0xff]
    %v41 = vld [vmem:[#allocation2 + $0x8] sm:$0xff]
    %v42 = vld [vmem:[#allocation5] sm:$0xf]
    %v43 = vld [vmem:[#allocation5 + $0x4] sm:$0xf]
    %v44 = vunpack.c.l.bf16 %v42
    %v45 = vunpack.c.l.bf16 %v43
    %v46 = vmul.f32 %v44, -1.0
    %v47 = vmul.f32 %v45, -1.0
    %v48 = vadd.f32 %v40, 1e-06
    %v49 = vadd.f32 %v41, 1e-06
    %v50 = vlog2.pop %v48
    %v51 = vmul.f32 %v50, 0.6931472
    %v52 = vlog2.pop %v49
    %v53 = vmul.f32 %v52, 0.6931472
    %v54 = vmul.f32 %v46, %v51
    %v55 = vmul.f32 %v47, %v53
    %v56 = vsub.f32 1.0, %v44
    %v57 = vsub.f32 1.0, %v45
    %v58 = vsub.f32 1.0, %v40
    %v59 = vsub.f32 1.0, %v41
    %v60 = vadd.f32 %v58, 1e-06
    %v61 = vadd.f32 %v59, 1e-06
    %v62 = vlog2.pop %v60
    %v63 = vmul.f32 %v62, 0.6931472
    %v64 = vlog2.pop %v61
    %v65 = vmul.f32 %v64, 0.6931472
    %v66 = vmul.f32 %v56, %v63
    %v67 = vmul.f32 %v57, %v65
    %v68 = vsub.f32 %v54, %v66
    %v69 = vsub.f32 %v55, %v67
    %v70 = vadd.f32 %v68, %v69
    %v71 = vrot.slane %v70, 4
    %v72 = vadd.f32 %v70, %v71
    %v73 = vrot.slane %v72, 2
    %v74 = vadd.f32 %v72, %v73
    %v75 = vrot.slane %v74, 1
    %v76 = vadd.f32 %v74, %v75
    %v77 = vlaneseq
    %v78 = vshrl.u32 %v77, 7
    %vm79 = vcmp.eq.s32.totalorder %v78, 0
    %v80 = vsel %vm79, %v76, 0.0
    %81 = vst [vmem:[#allocation7] sm:$0xff] %v80
    // Predicated region
    $region18: #{tpu_custom_call.1} parent=1 // pred_check
      _
    $region19: #{tpu_custom_call.1} parent=1 // pred_check_branch
      %83 = sbr.rel (0) target = $region21
    $region20: #{tpu_custom_call.1} parent=1 // pred_region
      %s85 = ssub.s32 128, 128
      %86 = vsyncadd [#allocation4], %s85
      %s88 = sshll.u32 [#allocation7], 4
      %s89 = int_to_ptr.vmem [resolvable:$true] %s88
      %91 = dma.vmem_to_hbm [thread:$0]  %s89, 128, %s2, [#allocation4]
    $region21: #{tpu_custom_call.1} parent=1 // pred_fallthru
      _
    // Predicated region
    $region22: #{tpu_custom_call.1} parent=1 // pred_check
      _
    $region23: #{tpu_custom_call.1} parent=1 // pred_check_branch
      %93 = sbr.rel (0) target = $region25
    $region24: #{tpu_custom_call.1} parent=1 // pred_region
      %94 = dma.done [#allocation4], 128
    $region25: #{tpu_custom_call.1} parent=1 // pred_fallthru
      _
    %95 = vsyncpa [#allocation3], 1
    %96 = vsyncpa [#allocation6], 1
    %97 = vsyncpa [#allocation4], 1

</llo_original>
